<compile_context>
chip_gen: v5e
topology: v5e:2x2
jax: 0.10.0
libtpu: 0.0.40
codegen_flags: <defaults>
</compile_context>

<pallas_src>
import jax
import jax.numpy as jnp
from jax.experimental import pallas as pl
from jax.experimental.pallas import tpu as pltpu

LANE = 128           # vreg lane width
SUBLANE = 8          # f32 sublanes per vreg
MAX_CHUNK_ROWS = 64  # <= 64 * 128 = 8192 anchors per grid step (~0.4 MiB/chunk)


def _round_up(x, m):
    return (x + m - 1) // m * m


def _branch_partial(loc_p, loc_t, cls_p, cls_t, valid):
    """Un-normalized partial sums of one MultiBoxLoss branch, lane-dense tiles.

    loc_p, loc_t : (4, R, 128) f32   box deltas
    cls_p        : (C, R, 128) f32   class logits
    cls_t        : (R, 128)    i32   class targets (0 = background / padding)
    valid        : (R, 128)    f32   1 where the CE term counts (0 on ignore/pad)
    Returns (loss_sum, num_pos).
    """
    pos = (cls_t != 0).astype(jnp.float32)                      # (R, 128)

    # Smooth L1 (beta = 1).  Coordinate-axis reduce is element-wise vreg adds.
    d = loc_p - loc_t
    ad = jnp.abs(d)
    sl1 = jnp.where(ad < 1.0, 0.5 * d * d, ad - 0.5)            # (4, R, 128)
    loc_map = jnp.sum(sl1, axis=0) * pos                        # (R, 128)

    # Softmax cross-entropy per anchor.
    c = cls_p.shape[0]
    if c == 2:
        # RPN fast path: no iota / one-hot / gather.
        l0 = cls_p[0]
        l1 = cls_p[1]
        m = jnp.maximum(l0, l1)
        lse = m + jnp.log(jnp.exp(l0 - m) + jnp.exp(l1 - m))
        picked = jnp.where(cls_t != 0, l1, l0)
    else:
        m = jnp.max(cls_p, axis=0)                              # (R, 128)
        lse = m + jnp.log(jnp.sum(jnp.exp(cls_p - m), axis=0))
        cidx = jax.lax.broadcasted_iota(jnp.int32, cls_p.shape, 0)
        onehot = (cidx == cls_t[None]).astype(jnp.float32)
        picked = jnp.sum(onehot * cls_p, axis=0)
    ce = (lse - picked) * valid                                 # (R, 128)

    # One fused cross-lane reduce for the loss map, one for num_pos.
    loss_map = loc_map + ce
    return jnp.sum(loss_map), jnp.sum(pos)


def _rcnn_loss_kernel(rpn_loc_p_ref, rpn_loc_t_ref, rpn_cls_p_ref,
                      rpn_cls_t_ref, rpn_valid_ref,
                      rc_loc_p_ref, rc_loc_t_ref, rc_cls_p_ref,
                      rc_cls_t_ref, rc_valid_ref,
                      loss_ref, acc_ref):
    """Chunked RPN MultiBoxLoss + one-shot RCNN MultiBoxLoss -> scalar SMEM."""
    step = pl.program_id(0)
    last = pl.num_programs(0) - 1

    @pl.when(step == 0)
    def _init():
        acc_ref[0] = jnp.float32(0.0)   # running RPN loc+cls sum
        acc_ref[1] = jnp.float32(0.0)   # running RPN num_pos
        loss_ref[0] = jnp.float32(0.0)

    rpn_s, rpn_np = _branch_partial(rpn_loc_p_ref[...], rpn_loc_t_ref[...],
                                    rpn_cls_p_ref[...], rpn_cls_t_ref[...],
                                    rpn_valid_ref[...])
    acc_ref[0] = acc_ref[0] + rpn_s
    acc_ref[1] = acc_ref[1] + rpn_np

    @pl.when(step == last)
    def _finalize():
        rpn_sum = acc_ref[0]
        rpn_npos = acc_ref[1]
        rpn_loss = jnp.where(rpn_npos > 0.0,
                             rpn_sum / jnp.maximum(rpn_npos, 1.0),
                             jnp.float32(0.0))
        rc_s, rc_np = _branch_partial(rc_loc_p_ref[...], rc_loc_t_ref[...],
                                      rc_cls_p_ref[...], rc_cls_t_ref[...],
                                      rc_valid_ref[...])
        rc_loss = jnp.where(rc_np > 0.0,
                            rc_s / jnp.maximum(rc_np, 1.0),
                            jnp.float32(0.0))
        loss_ref[0] = rpn_loss + rc_loss


def _pack_branch(loc_p, cls_p, loc_t, cls_t, valid, rows):
    """Lane-dense packing: anchor axis -> (rows, 128); coords/classes leading.

    These pads/transposes/casts fuse into the pallas_call operands via
    allow_input_fusion, so they are not standalone HLO passes over HBM.
    """
    loc_p = loc_p.reshape(-1, 4)
    n = loc_p.shape[0]
    n_pad = rows * LANE

    def to_lane_dense(x2d):                                      # (n,k)->(k,rows,128)
        x2d = jnp.pad(x2d.astype(jnp.float32), ((0, n_pad - n), (0, 0)))
        return x2d.T.reshape(x2d.shape[1], rows, LANE)

    loc_p2 = to_lane_dense(loc_p)
    loc_t2 = to_lane_dense(loc_t.reshape(-1, 4))
    cls_p2 = to_lane_dense(cls_p.reshape(n, -1))
    cls_t2 = jnp.pad(cls_t.reshape(-1).astype(jnp.int32),
                     (0, n_pad - n)).reshape(rows, LANE)
    valid2 = jnp.pad(valid.astype(jnp.float32),
                     (0, n_pad - n)).reshape(rows, LANE)
    return loc_p2, loc_t2, cls_p2, cls_t2, valid2


@jax.jit
def rcnn_loss_forward(loc_p, cls_p, loc_t, cls_t,
                      rpn_loc_p, rpn_cls_p, rpn_loc_t, rpn_cls_t, ignore):
    """Forward of RCNNLoss: RPN MultiBoxLoss (with ignore) + RCNN MultiBoxLoss."""
    # Flatten exactly as the torch module does.
    rpn_loc_p = rpn_loc_p.reshape(-1, 4)
    rpn_cls_p = rpn_cls_p.reshape(-1, rpn_cls_p.shape[-1])

    n_rpn = rpn_loc_p.shape[0]
    n_rc = loc_p.reshape(-1, 4).shape[0]

    # Row counts (multiples of 8 -> full (8,128) f32 vregs); RPN rows rounded up
    # to a whole number of grid chunks.
    rpn_rows = _round_up(max(pl.cdiv(n_rpn, LANE), 1), SUBLANE)
    chunk_rows = min(MAX_CHUNK_ROWS, rpn_rows)
    rpn_rows = _round_up(rpn_rows, chunk_rows)
    num_chunks = rpn_rows // chunk_rows
    rc_rows = _round_up(max(pl.cdiv(n_rc, LANE), 1), SUBLANE)

    # Validity masks (0 on padding; RPN also zeroed where `ignore` is set).
    rpn_valid = (ignore.reshape(-1) == 0).astype(jnp.float32)
    rc_valid = jnp.ones((n_rc,), jnp.float32)

    rpn_args = _pack_branch(rpn_loc_p, rpn_cls_p, rpn_loc_t, rpn_cls_t,
                            rpn_valid, rpn_rows)
    rc_args = _pack_branch(loc_p, cls_p, loc_t, cls_t, rc_valid, rc_rows)
    all_args = (*rpn_args, *rc_args)

    rpn_c = rpn_args[2].shape[0]
    rc_c = rc_args[2].shape[0]

    in_specs = [
        # RPN branch: chunked along the anchor-row axis.
        pl.BlockSpec((4, chunk_rows, LANE), lambda i: (0, i, 0)),
        pl.BlockSpec((4, chunk_rows, LANE), lambda i: (0, i, 0)),
        pl.BlockSpec((rpn_c, chunk_rows, LANE), lambda i: (0, i, 0)),
        pl.BlockSpec((chunk_rows, LANE), lambda i: (i, 0)),
        pl.BlockSpec((chunk_rows, LANE), lambda i: (i, 0)),
        # RCNN branch: small, resident full blocks (constant block index).
        pl.BlockSpec((4, rc_rows, LANE), lambda i: (0, 0, 0)),
        pl.BlockSpec((4, rc_rows, LANE), lambda i: (0, 0, 0)),
        pl.BlockSpec((rc_c, rc_rows, LANE), lambda i: (0, 0, 0)),
        pl.BlockSpec((rc_rows, LANE), lambda i: (0, 0)),
        pl.BlockSpec((rc_rows, LANE), lambda i: (0, 0)),
    ]

    bytes_accessed = sum(int(a.size) * a.dtype.itemsize for a in all_args) + 4
    flops = 30 * (rpn_rows + rc_rows) * LANE
    transcendentals = ((rpn_c + 1) * rpn_rows + (rc_c + 1) * rc_rows) * LANE

    loss = pl.pallas_call(
        _rcnn_loss_kernel,
        out_shape=jax.ShapeDtypeStruct((1,), jnp.float32),
        grid=(num_chunks,),
        in_specs=in_specs,
        out_specs=pl.BlockSpec(memory_space=pltpu.MemorySpace.SMEM),
        scratch_shapes=[pltpu.SMEM((2,), jnp.float32)],
        compiler_params=pltpu.CompilerParams(
            dimension_semantics=("arbitrary",),
            allow_input_fusion=[True] * len(all_args),
        ),
        cost_estimate=pl.CostEstimate(
            flops=int(flops),
            transcendentals=int(transcendentals),
            bytes_accessed=int(bytes_accessed)),
    )(*all_args)
    return loss[0]


# -------------------- pure-JAX reference (for correctness check) --------------------
def _reference_multibox(loc_p, cls_p, loc_t, cls_t, ignore=None):
    loc_p = loc_p.reshape(-1, 4).astype(jnp.float32)
    n = loc_p.shape[0]
    cls_p = cls_p.reshape(n, -1).astype(jnp.float32)
    loc_t = loc_t.reshape(n, 4).astype(jnp.float32)
    cls_t = cls_t.reshape(n).astype(jnp.int32)
    pos = (cls_t != 0).astype(jnp.float32)
    num_pos = jnp.sum(pos)
    d = loc_p - loc_t
    ad = jnp.abs(d)
    sl1 = jnp.where(ad < 1.0, 0.5 * d * d, ad - 0.5)
    loc_sum = jnp.sum(sl1 * pos[:, None])
    ce = jax.nn.logsumexp(cls_p, axis=-1) - jnp.take_along_axis(
        cls_p, cls_t[:, None], axis=-1)[:, 0]
    if ignore is not None:
        ce = ce * jnp.logical_not(ignore).astype(jnp.float32)
    cls_sum = jnp.sum(ce)
    total = (loc_sum + cls_sum) / jnp.maximum(num_pos, 1.0)
    return jnp.where(num_pos > 0, total, jnp.float32(0.0))


if __name__ == "__main__":
    key = jax.random.PRNGKey(0)
    ks = jax.random.split(key, 10)

    # Small synthetic shapes consistent with the forward:
    batch, anchors_per_img, rpn_classes = 2, 128, 2      # RPN: 256 anchors total
    num_rois, rcnn_classes = 64, 8                       # RCNN: 64 RoIs
    n_rpn = batch * anchors_per_img

    # RPN head outputs (arrive with a batch dim; the module flattens them).
    rpn_loc_p = jax.random.normal(ks[0], (batch, anchors_per_img, 4), jnp.float32)
    rpn_cls_p = jax.random.normal(ks[1], (batch, anchors_per_img, rpn_classes), jnp.float32)
    rpn_loc_t = jax.random.normal(ks[2], (n_rpn, 4), jnp.float32)
    rpn_cls_t = jax.random.randint(ks[3], (n_rpn,), 0, rpn_classes, jnp.int32)
    ignore = jax.random.bernoulli(ks[4], 0.1, (n_rpn,))

    # RCNN head outputs (already flat per-RoI).
    loc_p = jax.random.normal(ks[5], (num_rois, 4), jnp.float32)
    cls_p = jax.random.normal(ks[6], (num_rois, rcnn_classes), jnp.float32)
    loc_t = jax.random.normal(ks[7], (num_rois, 4), jnp.float32)
    cls_t = jax.random.randint(ks[8], (num_rois,), 0, rcnn_classes, jnp.int32)

    loss = rcnn_loss_forward(loc_p, cls_p, loc_t, cls_t,
                             rpn_loc_p, rpn_cls_p, rpn_loc_t, rpn_cls_t, ignore)
    loss = jax.block_until_ready(loss)

    ref = (_reference_multibox(rpn_loc_p.reshape(-1, 4),
                               rpn_cls_p.reshape(-1, rpn_classes),
                               rpn_loc_t, rpn_cls_t, ignore)
           + _reference_multibox(loc_p, cls_p, loc_t, cls_t))

    assert loss.shape == () and bool(jnp.isfinite(loss))
    assert jnp.allclose(loss, ref, rtol=1e-4, atol=1e-4), (loss, ref)
    print("KERNEL_OK")
</pallas_src>

<mosaic_0001>
module attributes {stable_mosaic.version = 11 : i64} {
  func.func @_rcnn_loss_kernel(%arg0: i32, %arg1: memref<4x8x128xf32, #tpu.memory_space<vmem>>, %arg2: memref<4x8x128xf32, #tpu.memory_space<vmem>>, %arg3: memref<2x8x128xf32, #tpu.memory_space<vmem>>, %arg4: memref<8x128xi32, #tpu.memory_space<vmem>>, %arg5: memref<8x128xf32, #tpu.memory_space<vmem>>, %arg6: memref<4x8x128xf32, #tpu.memory_space<vmem>>, %arg7: memref<4x8x128xf32, #tpu.memory_space<vmem>>, %arg8: memref<8x8x128xf32, #tpu.memory_space<vmem>>, %arg9: memref<8x128xi32, #tpu.memory_space<vmem>>, %arg10: memref<8x128xf32, #tpu.memory_space<vmem>>, %arg11: memref<1xf32, #tpu.memory_space<smem>>, %arg12: memref<2xf32, #tpu.memory_space<smem>>) attributes {dimension_semantics = [#tpu.dimension_semantics<arbitrary>], iteration_bounds = array<i64: 1>, scalar_prefetch = 0 : i64, scratch_operands = 1 : i64, tpu.core_type = #tpu.core_type<tc>, window_params = [{transform_indices = @transform_0, window_bounds = array<i64: 4, 8, 128>}, {transform_indices = @transform_1, window_bounds = array<i64: 4, 8, 128>}, {transform_indices = @transform_2, window_bounds = array<i64: 2, 8, 128>}, {transform_indices = @transform_3, window_bounds = array<i64: 8, 128>}, {transform_indices = @transform_4, window_bounds = array<i64: 8, 128>}, {pipeline_mode = #tpu.pipeline_mode<synchronous>, transform_indices = @transform_5, window_bounds = array<i64: 4, 8, 128>}, {pipeline_mode = #tpu.pipeline_mode<synchronous>, transform_indices = @transform_6, window_bounds = array<i64: 4, 8, 128>}, {pipeline_mode = #tpu.pipeline_mode<synchronous>, transform_indices = @transform_7, window_bounds = array<i64: 8, 8, 128>}, {pipeline_mode = #tpu.pipeline_mode<synchronous>, transform_indices = @transform_8, window_bounds = array<i64: 8, 128>}, {pipeline_mode = #tpu.pipeline_mode<synchronous>, transform_indices = @transform_9, window_bounds = array<i64: 8, 128>}, {transform_indices = @transform_10, window_bounds = array<i64: 1>}]} {
    %c0_i32 = arith.constant 0 : i32
    %0 = arith.cmpi eq, %arg0, %c0_i32 : i32
    %1 = arith.extui %0 : i1 to i32
    %c0_i32_0 = arith.constant 0 : i32
    %2 = arith.cmpi ne, %1, %c0_i32_0 : i32
    scf.if %2 {
      %cst_25 = arith.constant 0.000000e+00 : f32
      %c0_26 = arith.constant 0 : index
      %59 = memref.load %arg12[%c0_26] : memref<2xf32, #tpu.memory_space<smem>>
      memref.store %cst_25, %arg12[%c0_26] : memref<2xf32, #tpu.memory_space<smem>>
      %cst_27 = arith.constant 0.000000e+00 : f32
      %c1_28 = arith.constant 1 : index
      %60 = memref.load %arg12[%c1_28] : memref<2xf32, #tpu.memory_space<smem>>
      memref.store %cst_27, %arg12[%c1_28] : memref<2xf32, #tpu.memory_space<smem>>
      %cst_29 = arith.constant 0.000000e+00 : f32
      %c0_30 = arith.constant 0 : index
      %61 = memref.load %arg11[%c0_30] : memref<1xf32, #tpu.memory_space<smem>>
      memref.store %cst_29, %arg11[%c0_30] : memref<1xf32, #tpu.memory_space<smem>>
    } else {
    }
    %c0 = arith.constant 0 : index
    %c0_1 = arith.constant 0 : index
    %c0_2 = arith.constant 0 : index
    %3 = vector.load %arg1[%c0, %c0_1, %c0_2] : memref<4x8x128xf32, #tpu.memory_space<vmem>>, vector<4x8x128xf32>
    %c0_3 = arith.constant 0 : index
    %c0_4 = arith.constant 0 : index
    %c0_5 = arith.constant 0 : index
    %4 = vector.load %arg2[%c0_3, %c0_4, %c0_5] : memref<4x8x128xf32, #tpu.memory_space<vmem>>, vector<4x8x128xf32>
    %c0_6 = arith.constant 0 : index
    %c0_7 = arith.constant 0 : index
    %c0_8 = arith.constant 0 : index
    %5 = vector.load %arg3[%c0_6, %c0_7, %c0_8] : memref<2x8x128xf32, #tpu.memory_space<vmem>>, vector<2x8x128xf32>
    %c0_9 = arith.constant 0 : index
    %c0_10 = arith.constant 0 : index
    %6 = vector.load %arg4[%c0_9, %c0_10] : memref<8x128xi32, #tpu.memory_space<vmem>>, vector<8x128xi32>
    %c0_11 = arith.constant 0 : index
    %c0_12 = arith.constant 0 : index
    %7 = vector.load %arg5[%c0_11, %c0_12] : memref<8x128xf32, #tpu.memory_space<vmem>>, vector<8x128xf32>
    %c0_i32_13 = arith.constant 0 : i32
    %8 = vector.broadcast %c0_i32_13 : i32 to vector<8x128xi32>
    %9 = arith.cmpi ne, %6, %8 : vector<8x128xi32>
    %10 = arith.extui %9 : vector<8x128xi1> to vector<8x128xi32>
    %11 = arith.sitofp %10 : vector<8x128xi32> to vector<8x128xf32>
    %12 = arith.subf %3, %4 : vector<4x8x128xf32>
    %13 = math.absf %12 : vector<4x8x128xf32>
    %cst = arith.constant 1.000000e+00 : f32
    %14 = vector.broadcast %cst : f32 to vector<4x8x128xf32>
    %15 = arith.cmpf olt, %13, %14 : vector<4x8x128xf32>
    %cst_14 = arith.constant 5.000000e-01 : f32
    %16 = vector.broadcast %cst_14 : f32 to vector<4x8x128xf32>
    %17 = arith.mulf %16, %12 : vector<4x8x128xf32>
    %18 = arith.mulf %17, %12 : vector<4x8x128xf32>
    %cst_15 = arith.constant 5.000000e-01 : f32
    %19 = vector.broadcast %cst_15 : f32 to vector<4x8x128xf32>
    %20 = arith.subf %13, %19 : vector<4x8x128xf32>
    %21 = arith.select %15, %18, %20 : vector<4x8x128xi1>, vector<4x8x128xf32>
    %cst_16 = arith.constant dense<0.000000e+00> : vector<8x128xf32>
    %22 = vector.multi_reduction <add>, %21, %cst_16 [0] : vector<4x8x128xf32> to vector<8x128xf32>
    %23 = arith.mulf %22, %11 : vector<8x128xf32>
    %24 = vector.extract_strided_slice %5 {offsets = [0, 0, 0], sizes = [1, 8, 128], strides = [1, 1, 1]} : vector<2x8x128xf32> to vector<1x8x128xf32>
    %25 = vector.shape_cast %24 : vector<1x8x128xf32> to vector<8x128xf32>
    %26 = vector.extract_strided_slice %5 {offsets = [1, 0, 0], sizes = [1, 8, 128], strides = [1, 1, 1]} : vector<2x8x128xf32> to vector<1x8x128xf32>
    %27 = vector.shape_cast %26 : vector<1x8x128xf32> to vector<8x128xf32>
    %28 = arith.maximumf %25, %27 : vector<8x128xf32>
    %29 = arith.subf %25, %28 : vector<8x128xf32>
    %30 = math.exp %29 : vector<8x128xf32>
    %31 = arith.subf %27, %28 : vector<8x128xf32>
    %32 = math.exp %31 : vector<8x128xf32>
    %33 = arith.addf %30, %32 : vector<8x128xf32>
    %34 = math.log %33 : vector<8x128xf32>
    %35 = arith.addf %28, %34 : vector<8x128xf32>
    %c0_i32_17 = arith.constant 0 : i32
    %36 = vector.broadcast %c0_i32_17 : i32 to vector<8x128xi32>
    %37 = arith.cmpi ne, %6, %36 : vector<8x128xi32>
    %38 = arith.select %37, %27, %25 : vector<8x128xi1>, vector<8x128xf32>
    %39 = arith.subf %35, %38 : vector<8x128xf32>
    %40 = arith.mulf %39, %7 : vector<8x128xf32>
    %41 = arith.addf %23, %40 : vector<8x128xf32>
    %42 = vector.shape_cast %41 : vector<8x128xf32> to vector<1x8x128xf32>
    %cst_18 = arith.constant dense<0.000000e+00> : vector<1xf32>
    %43 = vector.multi_reduction <add>, %42, %cst_18 [1, 2] : vector<1x8x128xf32> to vector<1xf32>
    %44 = vector.shape_cast %43 : vector<1xf32> to vector<1x1x1xf32>
    %45 = vector.extract %44[0, 0, 0] : f32 from vector<1x1x1xf32>
    %46 = vector.shape_cast %11 : vector<8x128xf32> to vector<1x8x128xf32>
    %cst_19 = arith.constant dense<0.000000e+00> : vector<1xf32>
    %47 = vector.multi_reduction <add>, %46, %cst_19 [1, 2] : vector<1x8x128xf32> to vector<1xf32>
    %48 = vector.shape_cast %47 : vector<1xf32> to vector<1x1x1xf32>
    %49 = vector.extract %48[0, 0, 0] : f32 from vector<1x1x1xf32>
    %c0_20 = arith.constant 0 : index
    %50 = memref.load %arg12[%c0_20] : memref<2xf32, #tpu.memory_space<smem>>
    %51 = arith.addf %50, %45 : f32
    %c0_21 = arith.constant 0 : index
    %52 = memref.load %arg12[%c0_21] : memref<2xf32, #tpu.memory_space<smem>>
    memref.store %51, %arg12[%c0_21] : memref<2xf32, #tpu.memory_space<smem>>
    %c1 = arith.constant 1 : index
    %53 = memref.load %arg12[%c1] : memref<2xf32, #tpu.memory_space<smem>>
    %54 = arith.addf %53, %49 : f32
    %c1_22 = arith.constant 1 : index
    %55 = memref.load %arg12[%c1_22] : memref<2xf32, #tpu.memory_space<smem>>
    memref.store %54, %arg12[%c1_22] : memref<2xf32, #tpu.memory_space<smem>>
    %c0_i32_23 = arith.constant 0 : i32
    %56 = arith.cmpi eq, %arg0, %c0_i32_23 : i32
    %57 = arith.extui %56 : i1 to i32
    %c0_i32_24 = arith.constant 0 : i32
    %58 = arith.cmpi ne, %57, %c0_i32_24 : i32
    scf.if %58 {
      %c0_25 = arith.constant 0 : index
      %59 = memref.load %arg12[%c0_25] : memref<2xf32, #tpu.memory_space<smem>>
      %c1_26 = arith.constant 1 : index
      %60 = memref.load %arg12[%c1_26] : memref<2xf32, #tpu.memory_space<smem>>
      %cst_27 = arith.constant 0.000000e+00 : f32
      %61 = arith.cmpf ogt, %60, %cst_27 : f32
      %cst_28 = arith.constant 1.000000e+00 : f32
      %62 = arith.maximumf %60, %cst_28 : f32
      %63 = arith.divf %59, %62 : f32
      %cst_29 = arith.constant 0.000000e+00 : f32
      %64 = arith.select %61, %63, %cst_29 : f32
      %c0_30 = arith.constant 0 : index
      %c0_31 = arith.constant 0 : index
      %c0_32 = arith.constant 0 : index
      %65 = vector.load %arg6[%c0_30, %c0_31, %c0_32] : memref<4x8x128xf32, #tpu.memory_space<vmem>>, vector<4x8x128xf32>
      %c0_33 = arith.constant 0 : index
      %c0_34 = arith.constant 0 : index
      %c0_35 = arith.constant 0 : index
      %66 = vector.load %arg7[%c0_33, %c0_34, %c0_35] : memref<4x8x128xf32, #tpu.memory_space<vmem>>, vector<4x8x128xf32>
      %c0_36 = arith.constant 0 : index
      %c0_37 = arith.constant 0 : index
      %c0_38 = arith.constant 0 : index
      %67 = vector.load %arg8[%c0_36, %c0_37, %c0_38] : memref<8x8x128xf32, #tpu.memory_space<vmem>>, vector<8x8x128xf32>
      %c0_39 = arith.constant 0 : index
      %c0_40 = arith.constant 0 : index
      %68 = vector.load %arg9[%c0_39, %c0_40] : memref<8x128xi32, #tpu.memory_space<vmem>>, vector<8x128xi32>
      %c0_41 = arith.constant 0 : index
      %c0_42 = arith.constant 0 : index
      %69 = vector.load %arg10[%c0_41, %c0_42] : memref<8x128xf32, #tpu.memory_space<vmem>>, vector<8x128xf32>
      %c0_i32_43 = arith.constant 0 : i32
      %70 = vector.broadcast %c0_i32_43 : i32 to vector<8x128xi32>
      %71 = arith.cmpi ne, %68, %70 : vector<8x128xi32>
      %72 = arith.extui %71 : vector<8x128xi1> to vector<8x128xi32>
      %73 = arith.sitofp %72 : vector<8x128xi32> to vector<8x128xf32>
      %74 = arith.subf %65, %66 : vector<4x8x128xf32>
      %75 = math.absf %74 : vector<4x8x128xf32>
      %cst_44 = arith.constant 1.000000e+00 : f32
      %76 = vector.broadcast %cst_44 : f32 to vector<4x8x128xf32>
      %77 = arith.cmpf olt, %75, %76 : vector<4x8x128xf32>
      %cst_45 = arith.constant 5.000000e-01 : f32
      %78 = vector.broadcast %cst_45 : f32 to vector<4x8x128xf32>
      %79 = arith.mulf %78, %74 : vector<4x8x128xf32>
      %80 = arith.mulf %79, %74 : vector<4x8x128xf32>
      %cst_46 = arith.constant 5.000000e-01 : f32
      %81 = vector.broadcast %cst_46 : f32 to vector<4x8x128xf32>
      %82 = arith.subf %75, %81 : vector<4x8x128xf32>
      %83 = arith.select %77, %80, %82 : vector<4x8x128xi1>, vector<4x8x128xf32>
      %cst_47 = arith.constant dense<0.000000e+00> : vector<8x128xf32>
      %84 = vector.multi_reduction <add>, %83, %cst_47 [0] : vector<4x8x128xf32> to vector<8x128xf32>
      %85 = arith.mulf %84, %73 : vector<8x128xf32>
      %cst_48 = arith.constant dense<0xFF800000> : vector<8x128xf32>
      %86 = vector.multi_reduction <maximumf>, %67, %cst_48 [0] : vector<8x8x128xf32> to vector<8x128xf32>
      %87 = vector.shape_cast %86 : vector<8x128xf32> to vector<1x8x128xf32>
      %88 = vector.broadcast %87 : vector<1x8x128xf32> to vector<8x8x128xf32>
      %89 = arith.subf %67, %88 : vector<8x8x128xf32>
      %90 = math.exp %89 : vector<8x8x128xf32>
      %cst_49 = arith.constant dense<0.000000e+00> : vector<8x128xf32>
      %91 = vector.multi_reduction <add>, %90, %cst_49 [0] : vector<8x8x128xf32> to vector<8x128xf32>
      %92 = math.log %91 : vector<8x128xf32>
      %93 = arith.addf %86, %92 : vector<8x128xf32>
      %94 = tpu.iota {dimensions = array<i32: 0>} : vector<8x8x128xi32>
      %95 = vector.shape_cast %68 : vector<8x128xi32> to vector<1x8x128xi32>
      %96 = vector.broadcast %95 : vector<1x8x128xi32> to vector<8x8x128xi32>
      %97 = arith.cmpi eq, %94, %96 : vector<8x8x128xi32>
      %98 = arith.extui %97 : vector<8x8x128xi1> to vector<8x8x128xi32>
      %99 = arith.sitofp %98 : vector<8x8x128xi32> to vector<8x8x128xf32>
      %100 = arith.mulf %99, %67 : vector<8x8x128xf32>
      %cst_50 = arith.constant dense<0.000000e+00> : vector<8x128xf32>
      %101 = vector.multi_reduction <add>, %100, %cst_50 [0] : vector<8x8x128xf32> to vector<8x128xf32>
      %102 = arith.subf %93, %101 : vector<8x128xf32>
      %103 = arith.mulf %102, %69 : vector<8x128xf32>
      %104 = arith.addf %85, %103 : vector<8x128xf32>
      %105 = vector.shape_cast %104 : vector<8x128xf32> to vector<1x8x128xf32>
      %cst_51 = arith.constant dense<0.000000e+00> : vector<1xf32>
      %106 = vector.multi_reduction <add>, %105, %cst_51 [1, 2] : vector<1x8x128xf32> to vector<1xf32>
      %107 = vector.shape_cast %106 : vector<1xf32> to vector<1x1x1xf32>
      %108 = vector.extract %107[0, 0, 0] : f32 from vector<1x1x1xf32>
      %109 = vector.shape_cast %73 : vector<8x128xf32> to vector<1x8x128xf32>
      %cst_52 = arith.constant dense<0.000000e+00> : vector<1xf32>
      %110 = vector.multi_reduction <add>, %109, %cst_52 [1, 2] : vector<1x8x128xf32> to vector<1xf32>
      %111 = vector.shape_cast %110 : vector<1xf32> to vector<1x1x1xf32>
      %112 = vector.extract %111[0, 0, 0] : f32 from vector<1x1x1xf32>
      %cst_53 = arith.constant 0.000000e+00 : f32
      %113 = arith.cmpf ogt, %112, %cst_53 : f32
      %cst_54 = arith.constant 1.000000e+00 : f32
      %114 = arith.maximumf %112, %cst_54 : f32
      %115 = arith.divf %108, %114 : f32
      %cst_55 = arith.constant 0.000000e+00 : f32
      %116 = arith.select %113, %115, %cst_55 : f32
      %117 = arith.addf %64, %116 : f32
      %c0_56 = arith.constant 0 : index
      %118 = memref.load %arg11[%c0_56] : memref<1xf32, #tpu.memory_space<smem>>
      memref.store %117, %arg11[%c0_56] : memref<1xf32, #tpu.memory_space<smem>>
    } else {
    }
    return
  }
  func.func @transform_0(%arg0: i32) -> (i32, i32, i32) {
    %c0_i32 = arith.constant 0 : i32
    %c0_i32_0 = arith.constant 0 : i32
    %c0_i32_1 = arith.constant 0 : i32
    return %c0_i32, %arg0, %c0_i32_0 : i32, i32, i32
  }
  func.func @transform_1(%arg0: i32) -> (i32, i32, i32) {
    %c0_i32 = arith.constant 0 : i32
    %c0_i32_0 = arith.constant 0 : i32
    %c0_i32_1 = arith.constant 0 : i32
    return %c0_i32, %arg0, %c0_i32_0 : i32, i32, i32
  }
  func.func @transform_2(%arg0: i32) -> (i32, i32, i32) {
    %c0_i32 = arith.constant 0 : i32
    %c0_i32_0 = arith.constant 0 : i32
    %c0_i32_1 = arith.constant 0 : i32
    return %c0_i32, %arg0, %c0_i32_0 : i32, i32, i32
  }
  func.func @transform_3(%arg0: i32) -> (i32, i32) {
    %c0_i32 = arith.constant 0 : i32
    %c0_i32_0 = arith.constant 0 : i32
    return %arg0, %c0_i32 : i32, i32
  }
  func.func @transform_4(%arg0: i32) -> (i32, i32) {
    %c0_i32 = arith.constant 0 : i32
    %c0_i32_0 = arith.constant 0 : i32
    return %arg0, %c0_i32 : i32, i32
  }
  func.func @transform_5(%arg0: i32) -> (i32, i32, i32) {
    %c0_i32 = arith.constant 0 : i32
    %c0_i32_0 = arith.constant 0 : i32
    %c0_i32_1 = arith.constant 0 : i32
    %c0_i32_2 = arith.constant 0 : i32
    return %c0_i32, %c0_i32_0, %c0_i32_1 : i32, i32, i32
  }
  func.func @transform_6(%arg0: i32) -> (i32, i32, i32) {
    %c0_i32 = arith.constant 0 : i32
    %c0_i32_0 = arith.constant 0 : i32
    %c0_i32_1 = arith.constant 0 : i32
    %c0_i32_2 = arith.constant 0 : i32
    return %c0_i32, %c0_i32_0, %c0_i32_1 : i32, i32, i32
  }
  func.func @transform_7(%arg0: i32) -> (i32, i32, i32) {
    %c0_i32 = arith.constant 0 : i32
    %c0_i32_0 = arith.constant 0 : i32
    %c0_i32_1 = arith.constant 0 : i32
    %c0_i32_2 = arith.constant 0 : i32
    return %c0_i32, %c0_i32_0, %c0_i32_1 : i32, i32, i32
  }
  func.func @transform_8(%arg0: i32) -> (i32, i32) {
    %c0_i32 = arith.constant 0 : i32
    %c0_i32_0 = arith.constant 0 : i32
    %c0_i32_1 = arith.constant 0 : i32
    return %c0_i32, %c0_i32_0 : i32, i32
  }
  func.func @transform_9(%arg0: i32) -> (i32, i32) {
    %c0_i32 = arith.constant 0 : i32
    %c0_i32_0 = arith.constant 0 : i32
    %c0_i32_1 = arith.constant 0 : i32
    return %c0_i32, %c0_i32_0 : i32, i32
  }
  func.func @transform_10(%arg0: i32) -> i32 {
    %c0_i32 = arith.constant 0 : i32
    %c0_i32_0 = arith.constant 0 : i32
    return %c0_i32 : i32
  }
}

</mosaic_0001>

<llo_original>
// kernel: rcnn_loss_forward.2
$region0: #{rcnn_loss_forward.2}
  #allocation0 [shape = 'u32[]', space=smem, size = 0x4, offset = 0x4, fixed_abs, tag = 'smem constant byte address 0x4 - core index']
  #allocation1 [shape = 'u32[72,128]{1,0:T(1,128)}', space=vmem, size = 0x9000, scoped, tag = 'internal scratch']
  #allocation2 [shape = 'f32[2]{0:T(128)}', space=smem, size = 0x200, scoped, tag = 'scratch operand']
  #allocation3 [shape = 'u32[2048]{0}', space=vmem, size = 0x2000, scoped, tag = 'scoped memory for rcnn_loss_forward.2']
  #allocation4 [shape = 'u32[2048]{0}', space=vmem, size = 0x2000, scoped, tag = 'scoped memory for rcnn_loss_forward.2']
  #allocation5 [shape = 'u32[2048]{0}', space=vmem, size = 0x2000, scoped, tag = 'scoped memory for rcnn_loss_forward.2']
  #allocation6 [shape = 'u32[2048]{0}', space=vmem, size = 0x2000, scoped, tag = 'scoped memory for rcnn_loss_forward.2']
  #allocation7 [shape = 'u32[2048]{0}', space=vmem, size = 0x2000, scoped, tag = 'scoped memory for rcnn_loss_forward.2']
  #allocation8 [shape = 'u32[2048]{0}', space=vmem, size = 0x2000, scoped, tag = 'scoped memory for rcnn_loss_forward.2']
  #allocation9 [shape = 'u32[2048]{0}', space=vmem, size = 0x2000, scoped, tag = 'scoped memory for rcnn_loss_forward.2']
  #allocation10 [shape = 'u32[2048]{0}', space=vmem, size = 0x2000, scoped, tag = 'scoped memory for rcnn_loss_forward.2']
  #allocation11 [shape = 'u32[2048]{0}', space=vmem, size = 0x2000, scoped, tag = 'scoped memory for rcnn_loss_forward.2']
  #allocation12 [shape = 'u32[2048]{0}', space=vmem, size = 0x2000, scoped, tag = 'scoped memory for rcnn_loss_forward.2']
  #allocation13 [shape = 'u32[2048]{0}', space=vmem, size = 0x2000, scoped, tag = 'scoped memory for rcnn_loss_forward.2']
  #allocation14 [shape = 'u32[2048]{0}', space=vmem, size = 0x2000, scoped, tag = 'scoped memory for rcnn_loss_forward.2']
  #allocation15 [shape = 'u32[2048]{0}', space=vmem, size = 0x2000, scoped, tag = 'scoped memory for rcnn_loss_forward.2']
  #allocation16 [shape = 'u32[2048]{0}', space=vmem, size = 0x2000, scoped, tag = 'scoped memory for rcnn_loss_forward.2']
  #allocation17 [shape = 'u32[2048]{0}', space=vmem, size = 0x2000, scoped, tag = 'scoped memory for rcnn_loss_forward.2']
  #allocation18 [shape = 'u32[2048]{0}', space=vmem, size = 0x2000, scoped, tag = 'scoped memory for rcnn_loss_forward.2']
  #allocation19 [shape = 'u32[2048]{0}', space=vmem, size = 0x2000, scoped, tag = 'scoped memory for rcnn_loss_forward.2']
  #allocation20 [shape = 'u32[2048]{0}', space=vmem, size = 0x2000, scoped, tag = 'scoped memory for rcnn_loss_forward.2']
  #allocation21 [shape = 'u32[2048]{0}', space=vmem, size = 0x2000, scoped, tag = 'scoped memory for rcnn_loss_forward.2']
  #allocation22 [shape = 'u32[2048]{0}', space=vmem, size = 0x2000, scoped, tag = 'scoped memory for rcnn_loss_forward.2']
  %s0 = inlined_call_operand.vmem [shape: f32[1,8,8,128], index: 0, kind: input, shape index: {}]
  %s1 = inlined_call_operand.vmem [shape: f32[1,4,8,128], index: 1, kind: input, shape index: {}]
  %s2 = inlined_call_operand.vmem [shape: f32[1,4,8,128], index: 2, kind: input, shape index: {}]
  %s3 = inlined_call_operand.vmem [shape: f32[1,4,8,128], index: 3, kind: input, shape index: {}]
  %s4 = inlined_call_operand.vmem [shape: f32[1,4,8,128], index: 4, kind: input, shape index: {}]
  %s5 = inlined_call_operand.vmem [shape: f32[1,2,8,128], index: 5, kind: input, shape index: {}]
  %s6 = inlined_call_operand.vmem [shape: f32[64], index: 6, kind: input, shape index: {}]
  %s7 = inlined_call_operand.<no memory space> [shape: f32[], index: 7, kind: input, shape index: {}]
  %s8 = inlined_call_operand.vmem [shape: s32[64], index: 8, kind: input, shape index: {}]
  %s9 = inlined_call_operand.<no memory space> [shape: s32[], index: 9, kind: input, shape index: {}]
  %s10 = inlined_call_operand.vmem [shape: s32[256], index: 10, kind: input, shape index: {}]
  %s11 = inlined_call_operand.vmem [shape: pred[256], index: 11, kind: input, shape index: {}]
  %s12 = inlined_call_operand.<no memory space> [shape: pred[], index: 12, kind: input, shape index: {}]
  %s13 = inlined_call_operand.hbm [shape: f32[1], index: 13, kind: output, shape index: {}]
  %s14 = sld [smem:[#allocation0]]
  $region58: #{rcnn_loss_forward.2} parent=0
    _
  %s16 = ssub.s32 1, %s14
  %s17 = scalar_select 0, %s16, %s14
  %v18 = vstv %s9
  %v19 = vstv %s12
  %v21 = vshra.s32 %v19, 0
  %v22 = vand.u32 %v21, 255
  %v23 = vstv %s9
  %v24 = vstv %s7
  $region1: #{rcnn_loss_forward.2} parent=0
    #allocation23 [shape = 'u8[512]{0}', space=smem, size = 0x200, scoped, tag = 'output window, operand 0, single buffered']
    #allocation24 [shape = 's32[1]{0}', space=sflag, size = 0x4, scoped, tag = 'scoped memory for rcnn_loss_forward.2']
    #allocation25 [shape = 'u8[16384]{0}', space=vmem, size = 0x4000, dematerialized = true, scoped, tag = 'FusionAdapter Buffer %fusion.5 = f32[4,8,128]{2,1,0:T(8,128)} fusion(%param_4.7), kind=kLoop, calls=%fused_computation.6.clone, metadata={op_name="jit(rcnn_loss_forward)/reshape" stack_frame_id=17}']
    #allocation26 [shape = 'u8[16384]{0}', space=vmem, size = 0x4000, dematerialized = true, scoped, tag = 'FusionAdapter Buffer %fusion.4 = f32[4,8,128]{2,1,0:T(8,128)} fusion(%param_3.7), kind=kLoop, calls=%fused_computation.5.clone, metadata={op_name="jit(rcnn_loss_forward)/reshape" stack_frame_id=21}']
    #allocation27 [shape = 'u8[8192]{0}', space=vmem, size = 0x2000, dematerialized = true, scoped, tag = 'FusionAdapter Buffer %fusion.6 = f32[2,8,128]{2,1,0:T(8,128)} fusion(%param_5.8), kind=kLoop, calls=%fused_computation.11.clone, metadata={op_name="jit(rcnn_loss_forward)/reshape" stack_frame_id=25}']
    #allocation28 [shape = 'u8[4096]{0}', space=vmem, size = 0x1000, dematerialized = true, scoped, tag = 'FusionAdapter Buffer %fusion.10 = s32[8,128]{1,0:T(8,128)} fusion(%param_10.3, %param_9.15), kind=kLoop, calls=%fused_computation.16.clone, metadata={op_name="jit(rcnn_loss_forward)/reshape" stack_frame_id=27}']
    #allocation29 [shape = 'u8[4096]{0}', space=vmem, size = 0x1000, dematerialized = true, scoped, tag = 'FusionAdapter Buffer %fusion.9 = f32[8,128]{1,0:T(8,128)} fusion(%param_11.2, %param_12), kind=kLoop, calls=%fused_computation.15.clone, metadata={op_name="jit(rcnn_loss_forward)/reshape" stack_frame_id=29}']
    #allocation30 [shape = 'u8[16384]{0}', space=vmem, size = 0x4000, dematerialized = true, scoped, tag = 'FusionAdapter Buffer %fusion.3 = f32[4,8,128]{2,1,0:T(8,128)} fusion(%param_2.6), kind=kLoop, calls=%fused_computation.4.clone, metadata={op_name="jit(rcnn_loss_forward)/reshape" stack_frame_id=35}']
    #allocation31 [shape = 'u8[16384]{0}', space=vmem, size = 0x4000, dematerialized = true, scoped, tag = 'FusionAdapter Buffer %fusion.2 = f32[4,8,128]{2,1,0:T(8,128)} fusion(%param_1.11), kind=kLoop, calls=%fused_computation.3.clone, metadata={op_name="jit(rcnn_loss_forward)/reshape" stack_frame_id=39}']
    #allocation32 [shape = 'u8[32768]{0}', space=vmem, size = 0x8000, dematerialized = true, scoped, tag = 'FusionAdapter Buffer %fusion.1 = f32[8,8,128]{2,1,0:T(8,128)} fusion(%param_0.24), kind=kLoop, calls=%fused_computation.1.clone, metadata={op_name="jit(rcnn_loss_forward)/reshape" stack_frame_id=43}']
    #allocation33 [shape = 'u8[4096]{0}', space=vmem, size = 0x1000, dematerialized = true, scoped, tag = 'FusionAdapter Buffer %fusion.8 = s32[8,128]{1,0:T(8,128)} fusion(%param_8.15, %param_9.15), kind=kLoop, calls=%fused_computation.14.clone, metadata={op_name="jit(rcnn_loss_forward)/reshape" stack_frame_id=45}']
    #allocation34 [shape = 'u8[4096]{0}', space=vmem, size = 0x1000, dematerialized = true, scoped, tag = 'FusionAdapter Buffer %fusion.7 = f32[8,128]{1,0:T(8,128)} fusion(%param_6.13, %param_7.14), kind=kLoop, calls=%fused_computation.13.clone, metadata={op_name="jit(rcnn_loss_forward)/reshape" stack_frame_id=47}']
    %25 = vsyncpa [#allocation24], 0
    // Predicated region
    $region2: #{rcnn_loss_forward.2} parent=1 // pred_check
      _
    $region3: #{rcnn_loss_forward.2} parent=1 // pred_check_branch
      %27 = sbr.rel (0) target = $region5
    $region4: #{rcnn_loss_forward.2} parent=1 // pred_region
      _
    $region5: #{rcnn_loss_forward.2} parent=1 // pred_fallthru
      _
    // Predicated region
    $region6: #{rcnn_loss_forward.2} parent=1 // pred_check
      _
    $region7: #{rcnn_loss_forward.2} parent=1 // pred_check_branch
      %29 = sbr.rel (0) target = $region9
    $region8: #{rcnn_loss_forward.2} parent=1 // pred_region
      _
    $region9: #{rcnn_loss_forward.2} parent=1 // pred_fallthru
      _
    // Predicated region
    $region10: #{rcnn_loss_forward.2} parent=1 // pred_check
      _
    $region11: #{rcnn_loss_forward.2} parent=1 // pred_check_branch
      %31 = sbr.rel (0) target = $region13
    $region12: #{rcnn_loss_forward.2} parent=1 // pred_region
      _
    $region13: #{rcnn_loss_forward.2} parent=1 // pred_fallthru
      _
    // Predicated region
    $region14: #{rcnn_loss_forward.2} parent=1 // pred_check
      _
    $region15: #{rcnn_loss_forward.2} parent=1 // pred_check_branch
      %33 = sbr.rel (0) target = $region17
    $region16: #{rcnn_loss_forward.2} parent=1 // pred_region
      _
    $region17: #{rcnn_loss_forward.2} parent=1 // pred_fallthru
      _
    // Predicated region
    $region18: #{rcnn_loss_forward.2} parent=1 // pred_check
      _
    $region19: #{rcnn_loss_forward.2} parent=1 // pred_check_branch
      %35 = sbr.rel (0) target = $region21
    $region20: #{rcnn_loss_forward.2} parent=1 // pred_region
      _
    $region21: #{rcnn_loss_forward.2} parent=1 // pred_fallthru
      _
    // Predicated region
    $region22: #{rcnn_loss_forward.2} parent=1 // pred_check
      _
    $region23: #{rcnn_loss_forward.2} parent=1 // pred_check_branch
      %37 = sbr.rel (0) target = $region25
    $region24: #{rcnn_loss_forward.2} parent=1 // pred_region
      _
    $region25: #{rcnn_loss_forward.2} parent=1 // pred_fallthru
      _
    // Predicated region
    $region26: #{rcnn_loss_forward.2} parent=1 // pred_check
      _
    $region27: #{rcnn_loss_forward.2} parent=1 // pred_check_branch
      %39 = sbr.rel (0) target = $region29
    $region28: #{rcnn_loss_forward.2} parent=1 // pred_region
      _
    $region29: #{rcnn_loss_forward.2} parent=1 // pred_fallthru
      _
    // Predicated region
    $region30: #{rcnn_loss_forward.2} parent=1 // pred_check
      _
    $region31: #{rcnn_loss_forward.2} parent=1 // pred_check_branch
      %41 = sbr.rel (0) target = $region33
    $region32: #{rcnn_loss_forward.2} parent=1 // pred_region
      _
    $region33: #{rcnn_loss_forward.2} parent=1 // pred_fallthru
      _
    // Predicated region
    $region34: #{rcnn_loss_forward.2} parent=1 // pred_check
      _
    $region35: #{rcnn_loss_forward.2} parent=1 // pred_check_branch
      %43 = sbr.rel (0) target = $region37
    $region36: #{rcnn_loss_forward.2} parent=1 // pred_region
      _
    $region37: #{rcnn_loss_forward.2} parent=1 // pred_fallthru
      _
    // Predicated region
    $region38: #{rcnn_loss_forward.2} parent=1 // pred_check
      _
    $region39: #{rcnn_loss_forward.2} parent=1 // pred_check_branch
      %45 = sbr.rel (0) target = $region41
    $region40: #{rcnn_loss_forward.2} parent=1 // pred_region
      _
    $region41: #{rcnn_loss_forward.2} parent=1 // pred_fallthru
      _
    %v46 = vld [vmem:[%s4] sm:$0xff]
    %s48 = ssub.s32 256, 1
    %49 = vst [vmem:[#allocation25] sm:%s48] %v46
    %s50 = scalar_lea.vmem %s4, 8
    %v51 = vld [vmem:[%s50] sm:$0xff]
    %s52 = scalar_lea.vmem [#allocation25], 8
    %s54 = ssub.s32 256, 1
    %55 = vst [vmem:[%s52] sm:%s54] %v51
    %s56 = scalar_lea.vmem %s4, 16
    %v57 = vld [vmem:[%s56] sm:$0xff]
    %s58 = scalar_lea.vmem [#allocation25], 16
    %s60 = ssub.s32 256, 1
    %61 = vst [vmem:[%s58] sm:%s60] %v57
    %s62 = scalar_lea.vmem %s4, 24
    %v63 = vld [vmem:[%s62] sm:$0xff]
    %s64 = scalar_lea.vmem [#allocation25], 24
    %s66 = ssub.s32 256, 1
    %67 = vst [vmem:[%s64] sm:%s66] %v63
    %v68 = vld [vmem:[%s3] sm:$0xff]
    %s70 = ssub.s32 256, 1
    %71 = vst [vmem:[#allocation26] sm:%s70] %v68
    %s72 = scalar_lea.vmem %s3, 8
    %v73 = vld [vmem:[%s72] sm:$0xff]
    %s74 = scalar_lea.vmem [#allocation26], 8
    %s76 = ssub.s32 256, 1
    %77 = vst [vmem:[%s74] sm:%s76] %v73
    %s78 = scalar_lea.vmem %s3, 16
    %v79 = vld [vmem:[%s78] sm:$0xff]
    %s80 = scalar_lea.vmem [#allocation26], 16
    %s82 = ssub.s32 256, 1
    %83 = vst [vmem:[%s80] sm:%s82] %v79
    %s84 = scalar_lea.vmem %s3, 24
    %v85 = vld [vmem:[%s84] sm:$0xff]
    %s86 = scalar_lea.vmem [#allocation26], 24
    %s88 = ssub.s32 256, 1
    %89 = vst [vmem:[%s86] sm:%s88] %v85
    %v90 = vld [vmem:[%s5] sm:$0xff]
    %s92 = ssub.s32 256, 1
    %93 = vst [vmem:[#allocation27] sm:%s92] %v90
    %s94 = scalar_lea.vmem %s5, 8
    %v95 = vld [vmem:[%s94] sm:$0xff]
    %s96 = scalar_lea.vmem [#allocation27], 8
    %s98 = ssub.s32 256, 1
    %99 = vst [vmem:[%s96] sm:%s98] %v95
    %v100 = vld [vmem:[%s10] sm:$0x3]
    %v101 = vlaneseq
    %vm103 = vcmp.lt.s32.totalorder %v101, 256
    %v104 = vsel %vm103, %v100, %v18
    %s106 = ssub.s32 256, 1
    %107 = vst [vmem:[#allocation28] sm:%s106] %v104
    %s109 = sor.u32 15, 7
    %s110 = sand.u32 %s109, 1
    %v111 = vld [vmem:[%s11] ss:$0 sm:%s110]
    %v112 = vunpack.c.0.s8 %v111
    %v113 = vunpack.c.1.s8 %v111
    %v114 = vunpack.c.2.s8 %v111
    %v115 = vunpack.c.3.s8 %v111
    %v116 = vlaneseq
    %vm118 = vcmp.lt.s32.totalorder %v116, 256
    %v119 = vsel %vm118, %v112, %v22
    %120 = xla_tuple %v119
    %121 = xla_tuple %120
    %v122 = vcvt.s32.f32 %v119
    %123 = xla_tuple %v122
    %s125 = ssub.s32 256, 1
    %126 = vst [vmem:[#allocation29] sm:%s125] %v122
    %v127 = vld [vmem:[%s2] sm:$0xff]
    %s129 = ssub.s32 256, 1
    %130 = vst [vmem:[#allocation30] sm:%s129] %v127
    %s131 = scalar_lea.vmem %s2, 8
    %v132 = vld [vmem:[%s131] sm:$0xff]
    %s133 = scalar_lea.vmem [#allocation30], 8
    %s135 = ssub.s32 256, 1
    %136 = vst [vmem:[%s133] sm:%s135] %v132
    %s137 = scalar_lea.vmem %s2, 16
    %v138 = vld [vmem:[%s137] sm:$0xff]
    %s139 = scalar_lea.vmem [#allocation30], 16
    %s141 = ssub.s32 256, 1
    %142 = vst [vmem:[%s139] sm:%s141] %v138
    %s143 = scalar_lea.vmem %s2, 24
    %v144 = vld [vmem:[%s143] sm:$0xff]
    %s145 = scalar_lea.vmem [#allocation30], 24
    %s147 = ssub.s32 256, 1
    %148 = vst [vmem:[%s145] sm:%s147] %v144
    %v149 = vld [vmem:[%s1] sm:$0xff]
    %s151 = ssub.s32 256, 1
    %152 = vst [vmem:[#allocation31] sm:%s151] %v149
    %s153 = scalar_lea.vmem %s1, 8
    %v154 = vld [vmem:[%s153] sm:$0xff]
    %s155 = scalar_lea.vmem [#allocation31], 8
    %s157 = ssub.s32 256, 1
    %158 = vst [vmem:[%s155] sm:%s157] %v154
    %s159 = scalar_lea.vmem %s1, 16
    %v160 = vld [vmem:[%s159] sm:$0xff]
    %s161 = scalar_lea.vmem [#allocation31], 16
    %s163 = ssub.s32 256, 1
    %164 = vst [vmem:[%s161] sm:%s163] %v160
    %s165 = scalar_lea.vmem %s1, 24
    %v166 = vld [vmem:[%s165] sm:$0xff]
    %s167 = scalar_lea.vmem [#allocation31], 24
    %s169 = ssub.s32 256, 1
    %170 = vst [vmem:[%s167] sm:%s169] %v166
    %v171 = vld [vmem:[%s0] sm:$0xff]
    %s173 = ssub.s32 256, 1
    %174 = vst [vmem:[#allocation32] sm:%s173] %v171
    %s175 = scalar_lea.vmem %s0, 8
    %v176 = vld [vmem:[%s175] sm:$0xff]
    %s177 = scalar_lea.vmem [#allocation32], 8
    %s179 = ssub.s32 256, 1
    %180 = vst [vmem:[%s177] sm:%s179] %v176
    %s181 = scalar_lea.vmem %s0, 16
    %v182 = vld [vmem:[%s181] sm:$0xff]
    %s183 = scalar_lea.vmem [#allocation32], 16
    %s185 = ssub.s32 256, 1
    %186 = vst [vmem:[%s183] sm:%s185] %v182
    %s187 = scalar_lea.vmem %s0, 24
    %v188 = vld [vmem:[%s187] sm:$0xff]
    %s189 = scalar_lea.vmem [#allocation32], 24
    %s191 = ssub.s32 256, 1
    %192 = vst [vmem:[%s189] sm:%s191] %v188
    %s193 = scalar_lea.vmem %s0, 32
    %v194 = vld [vmem:[%s193] sm:$0xff]
    %s195 = scalar_lea.vmem [#allocation32], 32
    %s197 = ssub.s32 256, 1
    %198 = vst [vmem:[%s195] sm:%s197] %v194
    %s199 = scalar_lea.vmem %s0, 40
    %v200 = vld [vmem:[%s199] sm:$0xff]
    %s201 = scalar_lea.vmem [#allocation32], 40
    %s203 = ssub.s32 256, 1
    %204 = vst [vmem:[%s201] sm:%s203] %v200
    %s205 = scalar_lea.vmem %s0, 48
    %v206 = vld [vmem:[%s205] sm:$0xff]
    %s207 = scalar_lea.vmem [#allocation32], 48
    %s209 = ssub.s32 256, 1
    %210 = vst [vmem:[%s207] sm:%s209] %v206
    %s211 = scalar_lea.vmem %s0, 56
    %v212 = vld [vmem:[%s211] sm:$0xff]
    %s213 = scalar_lea.vmem [#allocation32], 56
    %s215 = ssub.s32 256, 1
    %216 = vst [vmem:[%s213] sm:%s215] %v212
    %v217 = vld [vmem:[%s8] sm:$0x1]
    %v218 = vlaneseq
    %vm220 = vcmp.lt.s32.totalorder %v218, 64
    %v221 = vsel %vm220, %v217, %v23
    %s223 = ssub.s32 256, 1
    %224 = vst [vmem:[#allocation33] sm:%s223] %v221
    %v225 = vld [vmem:[%s6] sm:$0x1]
    %v226 = vlaneseq
    %vm228 = vcmp.lt.s32.totalorder %v226, 64
    %v229 = vsel %vm228, %v225, %v24
    %s231 = ssub.s32 256, 1
    %232 = vst [vmem:[#allocation34] sm:%s231] %v229
    %p233 = scmp.eq.s32.totalorder 0, 0
    // Predicated region
    $region42: #{rcnn_loss_forward.2} parent=1 // pred_check
      %p234 = pneg %p233
    $region43: #{rcnn_loss_forward.2} parent=1 // pred_check_branch
      %236 = sbr.rel (%p234) target = $region45
    $region44: #{rcnn_loss_forward.2} parent=1 // pred_region
      %s237 = scalar_lea.smem [#allocation2], 0
      %238 = sst [smem:[%s237]] 0.0
      %s239 = scalar_lea.smem [#allocation2], 1
      %240 = sst [smem:[%s239]] 0.0
      %s241 = scalar_lea.smem [#allocation23], 0
      %242 = sst [smem:[%s241]] 0.0
    $region45: #{rcnn_loss_forward.2} parent=1 // pred_fallthru
      _
    %v243 = vld [vmem:[#allocation25] sm:$0xff]
    %v244 = vld [vmem:[#allocation25 + $0x8] sm:$0xff]
    %v245 = vld [vmem:[#allocation25 + $0x10] sm:$0xff]
    %v246 = vld [vmem:[#allocation25 + $0x18] sm:$0xff]
    %v247 = vld [vmem:[#allocation26] sm:$0xff]
    %v248 = vld [vmem:[#allocation26 + $0x8] sm:$0xff]
    %v249 = vld [vmem:[#allocation26 + $0x10] sm:$0xff]
    %v250 = vld [vmem:[#allocation26 + $0x18] sm:$0xff]
    %v251 = vld [vmem:[#allocation27] sm:$0xff]
    %v252 = vld [vmem:[#allocation27 + $0x8] sm:$0xff]
    %v253 = vld [vmem:[#allocation28] sm:$0xff]
    %v254 = vld [vmem:[#allocation29] sm:$0xff]
    %vm255 = vcmp.ne.s32.totalorder %v253, 0
    %v256 = vsel %vm255, 1, 0
    %v257 = vcvt.s32.f32 %v256
    %v258 = vsub.f32 %v243, %v247
    %v259 = vsub.f32 %v244, %v248
    %v260 = vsub.f32 %v245, %v249
    %v261 = vsub.f32 %v246, %v250
    %v262 = vand.u32 2147483647, %v258
    %v263 = vand.u32 2147483647, %v259
    %v264 = vand.u32 2147483647, %v260
    %v265 = vand.u32 2147483647, %v261
    %vm266 = vcmp.lt.f32.partialorder %v262, 1.0
    %vm267 = vcmp.lt.f32.partialorder %v263, 1.0
    %vm268 = vcmp.lt.f32.partialorder %v264, 1.0
    %vm269 = vcmp.lt.f32.partialorder %v265, 1.0
    %v270 = vmul.f32 %v258, 0.5
    %v271 = vmul.f32 %v259, 0.5
    %v272 = vmul.f32 %v260, 0.5
    %v273 = vmul.f32 %v261, 0.5
    %v274 = vmul.f32 %v270, %v258
    %v275 = vmul.f32 %v271, %v259
    %v276 = vmul.f32 %v272, %v260
    %v277 = vmul.f32 %v273, %v261
    %v278 = vsub.f32 %v262, 0.5
    %v279 = vsub.f32 %v263, 0.5
    %v280 = vsub.f32 %v264, 0.5
    %v281 = vsub.f32 %v265, 0.5
    %v282 = vsel %vm266, %v274, %v278
    %v283 = vsel %vm267, %v275, %v279
    %v284 = vsel %vm268, %v276, %v280
    %v285 = vsel %vm269, %v277, %v281
    %v286 = vadd.f32 %v282, %v283
    %v287 = vadd.f32 %v286, %v284
    %v288 = vadd.f32 %v287, %v285
    %v289 = vmul.f32 %v288, %v257
    %v290 = vmax.f32 %v251, %v252
    %v291 = vsub.f32 %v251, %v290
    %v292 = vmul.f32 %v291, 1.442695
    %v293 = vpow.pop %v292
    %v294 = vsub.f32 %v252, %v290
    %v295 = vmul.f32 %v294, 1.442695
    %v296 = vpow.pop %v295
    %v297 = vadd.f32 %v293, %v296
    %v298 = vlog2.pop %v297
    %v299 = vmul.f32 %v298, 0.6931472
    %v300 = vadd.f32 %v290, %v299
    %v301 = vsel %vm255, %v252, %v251
    %v302 = vsub.f32 %v300, %v301
    %v303 = vmul.f32 %v302, %v254
    %v304 = vadd.f32 %v289, %v303
    %305 = vadd.xlane.f32.xlu0 %v304
    %v306 = vpop.xlane.xlu0 %305
    %v307 = vrot.slane %v306, 4
    %v308 = vadd.f32 %v306, %v307
    %v309 = vrot.slane %v308, 2
    %v310 = vadd.f32 %v308, %v309
    %v311 = vrot.slane %v310, 1
    %v312 = vadd.f32 %v310, %v311
    %s313 = vtos %v312
    %314 = vadd.xlane.f32.xlu0 %v257
    %v315 = vpop.xlane.xlu0 %314
    %v316 = vrot.slane %v315, 4
    %v317 = vadd.f32 %v315, %v316
    %v318 = vrot.slane %v317, 2
    %v319 = vadd.f32 %v317, %v318
    %v320 = vrot.slane %v319, 1
    %v321 = vadd.f32 %v319, %v320
    %s322 = vtos %v321
    %s323 = sld [smem:[#allocation2]]
    %s324 = sadd.f32 %s323, %s313
    %s325 = scalar_lea.smem [#allocation2], 0
    %326 = sst [smem:[%s325]] %s324
    %s327 = sld [smem:[#allocation2 + $0x1]]
    %s328 = sadd.f32 %s327, %s322
    %s329 = scalar_lea.smem [#allocation2], 1
    %330 = sst [smem:[%s329]] %s328
    // Predicated region
    $region46: #{rcnn_loss_forward.2} parent=1 // pred_check
      %p331 = pneg %p233
    $region47: #{rcnn_loss_forward.2} parent=1 // pred_check_branch
      %333 = sbr.rel (%p331) target = $region49
    $region48: #{rcnn_loss_forward.2} parent=1 // pred_region
      %s334 = sld [smem:[#allocation2]]
      %s335 = sld [smem:[#allocation2 + $0x1]]
      %p336 = scmp.gt.f32.partialorder %s335, 0.0
      %s337 = smax.f32 %s335, 1.0
      %v338 = vstv %s337
      %v339 = vrcp.pop %v338
      %v340 = vmul.f32 %v338, %v339
      %v341 = vsub.f32 1.0, %v340
      %v342 = vmul.f32 %v339, %v341
      %v343 = vadd.f32 %v339, %v342
      %vm344 = vweird.f32 %v338
      %vm345 = vweird.f32 %v339
      %vm346 = vmor %vm344, %vm345
      %v347 = vsel %vm346, %v339, %v343
      %v348 = vand.u32 2147483647, %v338
      %vm349 = vcmp.eq.f32.partialorder %v348, 8.507059e+37
      %v350 = vand.u32 %v338, 2147483648
      %v351 = vor.u32 1.1754944e-38, %v350
      %v352 = vsel %vm349, %v351, %v347
      %s353 = vtos %v352
      %s354 = smul.f32 %s334, %s353
      %s355 = scalar_select %p336, %s354, 0.0
      %v356 = vld [vmem:[#allocation30] sm:$0xff]
      %v357 = vld [vmem:[#allocation30 + $0x8] sm:$0xff]
      %v358 = vld [vmem:[#allocation30 + $0x10] sm:$0xff]
      %v359 = vld [vmem:[#allocation30 + $0x18] sm:$0xff]
      %v360 = vld [vmem:[#allocation31] sm:$0xff]
      %v361 = vld [vmem:[#allocation31 + $0x8] sm:$0xff]
      %v362 = vld [vmem:[#allocation31 + $0x10] sm:$0xff]
      %v363 = vld [vmem:[#allocation31 + $0x18] sm:$0xff]
      %v364 = vld [vmem:[#allocation32] sm:$0xff]
      %v365 = vld [vmem:[#allocation32 + $0x8] sm:$0xff]
      %v366 = vld [vmem:[#allocation32 + $0x10] sm:$0xff]
      %v367 = vld [vmem:[#allocation32 + $0x18] sm:$0xff]
      %v368 = vld [vmem:[#allocation32 + $0x20] sm:$0xff]
      %v369 = vld [vmem:[#allocation32 + $0x28] sm:$0xff]
      %v370 = vld [vmem:[#allocation32 + $0x30] sm:$0xff]
      %v371 = vld [vmem:[#allocation32 + $0x38] sm:$0xff]
      %v372 = vld [vmem:[#allocation33] sm:$0xff]
      %v373 = vld [vmem:[#allocation34] sm:$0xff]
      %vm374 = vcmp.ne.s32.totalorder %v372, 0
      %v375 = vsel %vm374, 1, 0
      %v376 = vcvt.s32.f32 %v375
      %v377 = vsub.f32 %v356, %v360
      %v378 = vsub.f32 %v357, %v361
      %v379 = vsub.f32 %v358, %v362
      %v380 = vsub.f32 %v359, %v363
      %v381 = vand.u32 2147483647, %v377
      %v382 = vand.u32 2147483647, %v378
      %v383 = vand.u32 2147483647, %v379
      %v384 = vand.u32 2147483647, %v380
      %vm385 = vcmp.lt.f32.partialorder %v381, 1.0
      %vm386 = vcmp.lt.f32.partialorder %v382, 1.0
      %vm387 = vcmp.lt.f32.partialorder %v383, 1.0
      %vm388 = vcmp.lt.f32.partialorder %v384, 1.0
      %v389 = vmul.f32 %v377, 0.5
      %v390 = vmul.f32 %v378, 0.5
      %v391 = vmul.f32 %v379, 0.5
      %v392 = vmul.f32 %v380, 0.5
      %v393 = vmul.f32 %v389, %v377
      %v394 = vmul.f32 %v390, %v378
      %v395 = vmul.f32 %v391, %v379
      %v396 = vmul.f32 %v392, %v380
      %v397 = vsub.f32 %v381, 0.5
      %v398 = vsub.f32 %v382, 0.5
      %v399 = vsub.f32 %v383, 0.5
      %v400 = vsub.f32 %v384, 0.5
      %v401 = vsel %vm385, %v393, %v397
      %v402 = vsel %vm386, %v394, %v398
      %v403 = vsel %vm387, %v395, %v399
      %v404 = vsel %vm388, %v396, %v400
      %v405 = vadd.f32 %v401, %v402
      %v406 = vadd.f32 %v405, %v403
      %v407 = vadd.f32 %v406, %v404
      %v408 = vmul.f32 %v407, %v376
      %v409 = vmax.f32 %v364, %v368
      %v410 = vmax.f32 %v365, %v369
      %v411 = vmax.f32 %v366, %v370
      %v412 = vmax.f32 %v367, %v371
      %v413 = vmax.f32 %v409, %v410
      %v414 = vmax.f32 %v411, %v412
      %v415 = vmax.f32 %v413, %v414
      %v416 = vsub.f32 %v364, %v415
      %v417 = vsub.f32 %v365, %v415
      %v418 = vsub.f32 %v366, %v415
      %v419 = vsub.f32 %v367, %v415
      %v420 = vsub.f32 %v368, %v415
      %v421 = vsub.f32 %v369, %v415
      %v422 = vsub.f32 %v370, %v415
      %v423 = vsub.f32 %v371, %v415
      %v424 = vmul.f32 %v416, 1.442695
      %v425 = vpow.pop %v424
      %v426 = vmul.f32 %v417, 1.442695
      %v427 = vpow.pop %v426
      %v428 = vmul.f32 %v418, 1.442695
      %v429 = vpow.pop %v428
      %v430 = vmul.f32 %v419, 1.442695
      %v431 = vpow.pop %v430
      %v432 = vmul.f32 %v420, 1.442695
      %v433 = vpow.pop %v432
      %v434 = vmul.f32 %v421, 1.442695
      %v435 = vpow.pop %v434
      %v436 = vmul.f32 %v422, 1.442695
      %v437 = vpow.pop %v436
      %v438 = vmul.f32 %v423, 1.442695
      %v439 = vpow.pop %v438
      %v440 = vadd.f32 %v425, %v427
      %v441 = vadd.f32 %v440, %v429
      %v442 = vadd.f32 %v441, %v431
      %v443 = vadd.f32 %v442, %v433
      %v444 = vadd.f32 %v443, %v435
      %v445 = vadd.f32 %v444, %v437
      %v446 = vadd.f32 %v445, %v439
      %v447 = vlog2.pop %v446
      %v448 = vmul.f32 %v447, 0.6931472
      %v449 = vadd.f32 %v415, %v448
      %vm450 = vcmp.eq.s32.totalorder %v372, 0
      %vm451 = vcmp.eq.s32.totalorder %v372, 1
      %vm452 = vcmp.eq.s32.totalorder %v372, 2
      %vm453 = vcmp.eq.s32.totalorder %v372, 3
      %vm454 = vcmp.eq.s32.totalorder %v372, 4
      %vm455 = vcmp.eq.s32.totalorder %v372, 5
      %vm456 = vcmp.eq.s32.totalorder %v372, 6
      %vm457 = vcmp.eq.s32.totalorder %v372, 7
      %v458 = vsel %vm450, 1, 0
      %v459 = vsel %vm451, 1, 0
      %v460 = vsel %vm452, 1, 0
      %v461 = vsel %vm453, 1, 0
      %v462 = vsel %vm454, 1, 0
      %v463 = vsel %vm455, 1, 0
      %v464 = vsel %vm456, 1, 0
      %v465 = vsel %vm457, 1, 0
      %v466 = vcvt.s32.f32 %v458
      %v467 = vcvt.s32.f32 %v459
      %v468 = vcvt.s32.f32 %v460
      %v469 = vcvt.s32.f32 %v461
      %v470 = vcvt.s32.f32 %v462
      %v471 = vcvt.s32.f32 %v463
      %v472 = vcvt.s32.f32 %v464
      %v473 = vcvt.s32.f32 %v465
      %v474 = vmul.f32 %v466, %v364
      %v475 = vmul.f32 %v467, %v365
      %v476 = vmul.f32 %v468, %v366
      %v477 = vmul.f32 %v469, %v367
      %v478 = vmul.f32 %v470, %v368
      %v479 = vmul.f32 %v471, %v369
      %v480 = vmul.f32 %v472, %v370
      %v481 = vmul.f32 %v473, %v371
      %v482 = vadd.f32 %v474, %v475
      %v483 = vadd.f32 %v482, %v476
      %v484 = vadd.f32 %v483, %v477
      %v485 = vadd.f32 %v484, %v478
      %v486 = vadd.f32 %v485, %v479
      %v487 = vadd.f32 %v486, %v480
      %v488 = vadd.f32 %v487, %v481
      %v489 = vsub.f32 %v449, %v488
      %v490 = vmul.f32 %v489, %v373
      %v491 = vadd.f32 %v408, %v490
      %492 = vadd.xlane.f32.xlu0 %v491
      %v493 = vpop.xlane.xlu0 %492
      %v494 = vrot.slane %v493, 4
      %v495 = vadd.f32 %v493, %v494
      %v496 = vrot.slane %v495, 2
      %v497 = vadd.f32 %v495, %v496
      %v498 = vrot.slane %v497, 1
      %v499 = vadd.f32 %v497, %v498
      %s500 = vtos %v499
      %501 = vadd.xlane.f32.xlu0 %v376
      %v502 = vpop.xlane.xlu0 %501
      %v503 = vrot.slane %v502, 4
      %v504 = vadd.f32 %v502, %v503
      %v505 = vrot.slane %v504, 2
      %v506 = vadd.f32 %v504, %v505
      %v507 = vrot.slane %v506, 1
      %v508 = vadd.f32 %v506, %v507
      %s509 = vtos %v508
      %p510 = scmp.gt.f32.partialorder %s509, 0.0
      %s511 = smax.f32 %s509, 1.0
      %v512 = vstv %s511
      %v513 = vrcp.pop %v512
      %v514 = vmul.f32 %v512, %v513
      %v515 = vsub.f32 1.0, %v514
      %v516 = vmul.f32 %v513, %v515
      %v517 = vadd.f32 %v513, %v516
      %vm518 = vweird.f32 %v512
      %vm519 = vweird.f32 %v513
      %vm520 = vmor %vm518, %vm519
      %v521 = vsel %vm520, %v513, %v517
      %v522 = vand.u32 2147483647, %v512
      %vm523 = vcmp.eq.f32.partialorder %v522, 8.507059e+37
      %v524 = vand.u32 %v512, 2147483648
      %v525 = vor.u32 1.1754944e-38, %v524
      %v526 = vsel %vm523, %v525, %v521
      %s527 = vtos %v526
      %s528 = smul.f32 %s500, %s527
      %s529 = scalar_select %p510, %s528, 0.0
      %s530 = sadd.f32 %s355, %s529
      %s531 = scalar_lea.smem [#allocation23], 0
      %532 = sst [smem:[%s531]] %s530
    $region49: #{rcnn_loss_forward.2} parent=1 // pred_fallthru
      _
    // Predicated region
    $region50: #{rcnn_loss_forward.2} parent=1 // pred_check
      _
    $region51: #{rcnn_loss_forward.2} parent=1 // pred_check_branch
      %534 = sbr.rel (0) target = $region53
    $region52: #{rcnn_loss_forward.2} parent=1 // pred_region
      %536 = vsyncadd [#allocation24], 0
      %s538 = sshll.u32 %s13, 4
      %s539 = int_to_ptr.hbm [resolvable:$true] %s538
      %541 = dma.smem_to_hbm [#allocation23], 16, %s539, [#allocation24]
    $region53: #{rcnn_loss_forward.2} parent=1 // pred_fallthru
      _
    // Predicated region
    $region54: #{rcnn_loss_forward.2} parent=1 // pred_check
      _
    $region55: #{rcnn_loss_forward.2} parent=1 // pred_check_branch
      %543 = sbr.rel (0) target = $region57
    $region56: #{rcnn_loss_forward.2} parent=1 // pred_region
      %545 = dma.done [#allocation24], 16
    $region57: #{rcnn_loss_forward.2} parent=1 // pred_fallthru
      _
    %546 = sfence
    %547 = vsyncpa [#allocation24], 1

</llo_original>
